<compile_context>
chip_gen: v7x
topology: tpu7x:2x2x1
jax: 0.10.0
libtpu: 0.0.40
codegen_flags: <defaults>
</compile_context>

<pallas_src>
import jax
import jax.numpy as jnp
from jax.experimental import pallas as pl
from jax.experimental.pallas import tpu as pltpu

_MiB = 1024 * 1024


def _pointwise_conv_kernel(x_ref, w_ref, b_ref, o_ref):
    # x_ref: (bN, Cin, t_hw)  w_ref: (tCout, Cin)  b_ref: (tCout, 1) f32
    # o_ref: (bN, tCout, t_hw)
    w = w_ref[...]
    b = b_ref[...]
    for i in range(x_ref.shape[0]):          # bN is a small static constant
        acc = jnp.dot(w, x_ref[i], preferred_element_type=jnp.float32)
        o_ref[i] = (acc + b).astype(o_ref.dtype)


def _vmem_capacity_bytes():
    try:
        return int(pltpu.get_tpu_info().vmem_capacity_bytes)
    except Exception:
        return 64 * _MiB  # conservative fallback (v7x per-TensorCore VMEM)


def _fixed_bytes(c_out_tile, c_in, itemsize_w, w_bufs):
    # resident weight buffers + lane-padded (tCout, 128) f32 bias buffers
    return w_bufs * c_out_tile * c_in * itemsize_w + 2 * c_out_tile * 128 * 4


def _choose_hw_tile(hw, c_in, c_out_tile, itemsize, itemsize_w,
                    vmem_limit_bytes, *, n_other_steps, w_bufs, x_buffers):
    """Largest lane-dense (multiple-of-128) spatial tile that fits VMEM, nudged
    toward a near-divisor of HW so the masked ragged tail stays small."""
    cap = max(128, (hw // 128) * 128)
    fixed = _fixed_bytes(c_out_tile, c_in, itemsize_w, w_bufs)
    budget = max(vmem_limit_bytes - fixed - 4 * _MiB, 0)
    # per spatial column: x (x_buffers deep) + out (double buffered) + f32 acc
    per_col = (x_buffers * c_in + 2 * c_out_tile) * itemsize + 4 * c_out_tile
    t = (budget // max(per_col, 1)) // 128 * 128
    t = max(128, min(t, cap))
    # keep >= 4 total grid steps when possible (both v7x TensorCores get work)
    while t > 128 and n_other_steps * pl.cdiv(hw, t) < 4:
        t = max(128, ((t // 2) // 128) * 128)
    # among nearby multiples of 128, prefer the one minimizing the padded tail
    best_t = t
    best_waste = pl.cdiv(hw, t) * t - hw
    lo = max(128, ((t * 3 // 4) // 128) * 128, t - 128 * 128)
    for cand in range(t, lo - 1, -128):
        waste = pl.cdiv(hw, cand) * cand - hw
        if waste < best_waste:
            best_t, best_waste = cand, waste
            if waste == 0:
                break
    return best_t


def _choose_batch_group(n_batch, c_in, hw, c_out_tile, itemsize, itemsize_w,
                        vmem_limit_bytes, *, n_other_steps, w_bufs, x_buffers):
    """Small-HW regime: how many images per grid step (amortizes the ~0.35 us
    per-step overhead and tiny strided DMAs)."""
    if n_batch <= 1:
        return 1
    fixed = _fixed_bytes(c_out_tile, c_in, itemsize_w, w_bufs)
    budget = max(vmem_limit_bytes - fixed - 4 * _MiB, 0)
    per_img = (x_buffers * c_in + 2 * c_out_tile) * hw * itemsize
    acc_bytes = c_out_tile * hw * 4
    x_img = c_in * hw * itemsize
    target = 1 * _MiB          # aim for >= ~1 MiB of activations per step
    cap_bytes = 8 * _MiB       # but keep single blocks / DMA slabs modest
    best = 1
    for cand in range(2, min(n_batch, 16) + 1):
        if n_batch % cand:
            continue
        if cand * x_img > cap_bytes or cand * per_img + acc_bytes > budget:
            break
        # keep >= 4 total grid steps when that is achievable at all
        if (n_batch // cand) * n_other_steps < 4 and n_batch * n_other_steps >= 4:
            continue
        best = cand
        if cand * x_img >= target:
            break
    return best


def pointwise_conv(x_nchw, weight, bias=None, *, hw_tile=None, cout_tile=None,
                   batch_group=None, vmem_limit_bytes=None, x_buffers=2,
                   cast_weight_to_input_dtype=True):
    """1x1 Conv2d forward (stride 1, no padding), NCHW in / NCHW out.

    x_nchw: (N, Cin, H, W)
    weight: (Cout, Cin) or PyTorch-shaped (Cout, Cin, 1, 1)
    bias:   (Cout,) or None
    """
    N, Cin, H, W = x_nchw.shape
    if weight.ndim == 4:
        weight = weight.reshape(weight.shape[0], weight.shape[1])
    Cout = weight.shape[0]
    assert weight.shape[1] == Cin

    if (cast_weight_to_input_dtype
            and weight.dtype != x_nchw.dtype
            and jnp.issubdtype(x_nchw.dtype, jnp.floating)
            and jnp.dtype(x_nchw.dtype).itemsize <= jnp.dtype(weight.dtype).itemsize):
        weight = weight.astype(x_nchw.dtype)   # e.g. bf16 x bf16 -> f32 MXU path

    if bias is None:
        b_col = jnp.zeros((Cout, 1), dtype=jnp.float32)
    else:
        b_col = bias.reshape(Cout, 1).astype(jnp.float32)   # f32 once, on host

    HW = H * W
    x_flat = x_nchw.reshape(N, Cin, HW)       # free: H, W already contiguous

    itemsize = jnp.dtype(x_nchw.dtype).itemsize
    itemsize_w = jnp.dtype(weight.dtype).itemsize

    if vmem_limit_bytes is None:
        cap = _vmem_capacity_bytes()
        if cap <= 64 * _MiB:                  # v7x: 64 MiB physical per TC
            vmem_limit_bytes = min(56 * _MiB, cap - 8 * _MiB)
        else:                                 # v5e / v6e: 128 MiB physical
            vmem_limit_bytes = 100 * _MiB
    vmem_limit_bytes = int(vmem_limit_bytes)

    # ---- Cout tiling: keep the spatial tile large when the weight is big ----
    if cout_tile is None:
        if Cout > 256 and Cout * Cin * itemsize_w > 4 * _MiB:
            cout_tile = 256
        else:
            cout_tile = Cout
    cout_tile = min(int(cout_tile), Cout)
    if cout_tile != Cout:
        cout_tile = max(8, (cout_tile // 8) * 8)   # sublane rule for a tiled dim
    n_cout = pl.cdiv(Cout, cout_tile)
    w_bufs = 1 if n_cout == 1 else 2               # single-buffer a constant weight

    small_hw = HW <= 512

    # ---- spatial tile ----
    if hw_tile is None:
        if small_hw:
            hw_tile = HW                            # full-dim block
        else:
            hw_tile = _choose_hw_tile(
                HW, Cin, cout_tile, itemsize, itemsize_w, vmem_limit_bytes,
                n_other_steps=N * n_cout, w_bufs=w_bufs, x_buffers=x_buffers)
    hw_tile = min(int(hw_tile), HW)
    n_hw = pl.cdiv(HW, hw_tile)

    # ---- batch grouping (small-HW regime only) ----
    if batch_group is None:
        if small_hw and hw_tile == HW:
            batch_group = _choose_batch_group(
                N, Cin, HW, cout_tile, itemsize, itemsize_w, vmem_limit_bytes,
                n_other_steps=n_cout * n_hw, w_bufs=w_bufs, x_buffers=x_buffers)
        else:
            batch_group = 1
    bN = max(1, min(int(batch_group), N))
    while N % bN:                                   # keep batch blocks exact
        bN -= 1
    n_n = N // bN

    # hw fastest (sequential streaming within an image), cout slowest so the
    # weight block changes as rarely as possible.
    grid = (n_cout, n_n, n_hw)

    def _spec(shape, index_map, bufs=None):
        if bufs is None:
            return pl.BlockSpec(shape, index_map)
        return pl.BlockSpec(shape, index_map, pipeline_mode=pl.Buffered(bufs))

    w_pipeline_bufs = 1 if n_cout == 1 else None    # constant -> fetch once
    x_pipeline_bufs = None if x_buffers == 2 else x_buffers

    out_flat = pl.pallas_call(
        _pointwise_conv_kernel,
        out_shape=jax.ShapeDtypeStruct((N, Cout, HW), x_nchw.dtype),
        grid_spec=pltpu.PrefetchScalarGridSpec(
            num_scalar_prefetch=0,
            grid=grid,
            in_specs=[
                # Activation block: (bN, Cin, hw_tile)
                _spec((bN, Cin, hw_tile), lambda co, n, j: (n, 0, j),
                      x_pipeline_bufs),
                # Weight block: (cout_tile, Cin)
                _spec((cout_tile, Cin), lambda co, n, j: (co, 0),
                      w_pipeline_bufs),
                # Bias block: (cout_tile, 1), pre-cast to f32
                _spec((cout_tile, 1), lambda co, n, j: (co, 0),
                      w_pipeline_bufs),
            ],
            out_specs=pl.BlockSpec((bN, cout_tile, hw_tile),
                                   lambda co, n, j: (n, co, j)),
        ),
        compiler_params=pltpu.CompilerParams(
            dimension_semantics=("parallel", "parallel", "parallel"),
            vmem_limit_bytes=vmem_limit_bytes,
        ),
    )(x_flat, weight, b_col)

    return out_flat.reshape(N, Cout, H, W)


if __name__ == "__main__":
    key = jax.random.PRNGKey(0)
    k_x, k_w, k_b, k_x2, k_x3, k_w3 = jax.random.split(key, 6)

    # Test 1: small feature map (small-HW regime -> several images per step).
    N, Cin, H, W = 2, 4, 16, 16
    Cout = 8
    x = jax.random.normal(k_x, (N, Cin, H, W), dtype=jnp.float32)
    # PyTorch-shaped parameters: (Cout, Cin, 1, 1) weight, (Cout,) bias.
    weight = jax.random.normal(k_w, (Cout, Cin, 1, 1), dtype=jnp.float32) * 0.1
    bias = jax.random.normal(k_b, (Cout,), dtype=jnp.float32) * 0.1

    out = jax.block_until_ready(pointwise_conv(x, weight, bias))
    ref = (jnp.einsum("nchw,oc->nohw", x, weight.reshape(Cout, Cin))
           + bias[None, :, None, None])
    assert out.shape == (N, Cout, H, W)
    assert jnp.allclose(out, ref, atol=1e-5, rtol=1e-5)

    # Test 2: ragged spatial extent (full-dim block that is not a multiple of 128).
    x2 = jax.random.normal(k_x2, (N, Cin, 18, 18), dtype=jnp.float32)
    out2 = jax.block_until_ready(pointwise_conv(x2, weight, bias))
    ref2 = (jnp.einsum("nchw,oc->nohw", x2, weight.reshape(Cout, Cin))
            + bias[None, :, None, None])
    assert jnp.allclose(out2, ref2, atol=1e-5, rtol=1e-5)

    # Test 3: tiled large-HW path (masked ragged last spatial tile) + Cout tiling
    # (forced via cout_tile) + no bias.
    Cout3 = 16
    x3 = jax.random.normal(k_x3, (2, Cin, 40, 40), dtype=jnp.float32)
    w3 = jax.random.normal(k_w3, (Cout3, Cin), dtype=jnp.float32) * 0.1
    out3 = jax.block_until_ready(pointwise_conv(x3, w3, None, cout_tile=8))
    ref3 = jnp.einsum("nchw,oc->nohw", x3, w3)
    assert out3.shape == (2, Cout3, 40, 40)
    assert jnp.allclose(out3, ref3, atol=1e-5, rtol=1e-5)

    print("KERNEL_OK")
</pallas_src>

<mosaic_0001>
module attributes {stable_mosaic.version = 11 : i64} {
  func.func @_pointwise_conv_kernel(%arg0: i32, %arg1: i32, %arg2: i32, %arg3: memref<2x4x256xf32, #tpu.memory_space<vmem>>, %arg4: memref<8x4xf32, #tpu.memory_space<vmem>>, %arg5: memref<8x1xf32, #tpu.memory_space<vmem>>, %arg6: memref<2x8x256xf32, #tpu.memory_space<vmem>>) attributes {dimension_semantics = [#tpu.dimension_semantics<parallel>, #tpu.dimension_semantics<parallel>, #tpu.dimension_semantics<parallel>], iteration_bounds = array<i64: 1, 1, 1>, scalar_prefetch = 0 : i64, scratch_operands = 0 : i64, tpu.core_type = #tpu.core_type<tc>, window_params = [{transform_indices = @transform_0, window_bounds = array<i64: 2, 4, 256>}, {pipeline_mode = #tpu.pipeline_mode<synchronous>, transform_indices = @transform_1, window_bounds = array<i64: 8, 4>}, {pipeline_mode = #tpu.pipeline_mode<synchronous>, transform_indices = @transform_2, window_bounds = array<i64: 8, 1>}, {transform_indices = @transform_3, window_bounds = array<i64: 2, 8, 256>}]} {
    %c0 = arith.constant 0 : index
    %c0_0 = arith.constant 0 : index
    %0 = vector.load %arg4[%c0, %c0_0] : memref<8x4xf32, #tpu.memory_space<vmem>>, vector<8x4xf32>
    %c0_1 = arith.constant 0 : index
    %c0_2 = arith.constant 0 : index
    %1 = vector.load %arg5[%c0_1, %c0_2] : memref<8x1xf32, #tpu.memory_space<vmem>>, vector<8x1xf32>
    %c0_3 = arith.constant 0 : index
    %c0_4 = arith.constant 0 : index
    %c0_5 = arith.constant 0 : index
    %2 = vector.load %arg3[%c0_3, %c0_4, %c0_5] : memref<2x4x256xf32, #tpu.memory_space<vmem>>, vector<1x4x256xf32>
    %3 = vector.shape_cast %2 : vector<1x4x256xf32> to vector<4x256xf32>
    %cst = arith.constant dense<0.000000e+00> : vector<8x256xf32>
    %4 = tpu.matmul %0, %3, %cst {dimension_numbers = #tpu.dot_dimension_numbers<[1], [0], [0], [1], [0, 0, 1, 1], [], []>} : vector<8x4xf32>, vector<4x256xf32>, vector<8x256xf32> -> vector<8x256xf32>
    %5 = vector.broadcast %1 : vector<8x1xf32> to vector<8x256xf32>
    %6 = arith.addf %4, %5 : vector<8x256xf32>
    %c0_6 = arith.constant 0 : index
    %c0_7 = arith.constant 0 : index
    %c0_8 = arith.constant 0 : index
    %7 = vector.load %arg6[%c0_6, %c0_7, %c0_8] : memref<2x8x256xf32, #tpu.memory_space<vmem>>, vector<1x8x256xf32>
    %8 = vector.shape_cast %7 : vector<1x8x256xf32> to vector<8x256xf32>
    %9 = vector.shape_cast %6 : vector<8x256xf32> to vector<1x8x256xf32>
    tpu.vector_store %arg6[%c0_6, %c0_7, %c0_8], %9 {strides = array<i32>} : memref<2x8x256xf32, #tpu.memory_space<vmem>>, vector<1x8x256xf32>,
    %c1 = arith.constant 1 : index
    %c0_9 = arith.constant 0 : index
    %c0_10 = arith.constant 0 : index
    %10 = vector.load %arg3[%c1, %c0_9, %c0_10] : memref<2x4x256xf32, #tpu.memory_space<vmem>>, vector<1x4x256xf32>
    %11 = vector.shape_cast %10 : vector<1x4x256xf32> to vector<4x256xf32>
    %cst_11 = arith.constant dense<0.000000e+00> : vector<8x256xf32>
    %12 = tpu.matmul %0, %11, %cst_11 {dimension_numbers = #tpu.dot_dimension_numbers<[1], [0], [0], [1], [0, 0, 1, 1], [], []>} : vector<8x4xf32>, vector<4x256xf32>, vector<8x256xf32> -> vector<8x256xf32>
    %13 = vector.broadcast %1 : vector<8x1xf32> to vector<8x256xf32>
    %14 = arith.addf %12, %13 : vector<8x256xf32>
    %c1_12 = arith.constant 1 : index
    %c0_13 = arith.constant 0 : index
    %c0_14 = arith.constant 0 : index
    %15 = vector.load %arg6[%c1_12, %c0_13, %c0_14] : memref<2x8x256xf32, #tpu.memory_space<vmem>>, vector<1x8x256xf32>
    %16 = vector.shape_cast %15 : vector<1x8x256xf32> to vector<8x256xf32>
    %17 = vector.shape_cast %14 : vector<8x256xf32> to vector<1x8x256xf32>
    tpu.vector_store %arg6[%c1_12, %c0_13, %c0_14], %17 {strides = array<i32>} : memref<2x8x256xf32, #tpu.memory_space<vmem>>, vector<1x8x256xf32>,
    return
  }
  func.func @transform_0(%arg0: i32, %arg1: i32, %arg2: i32) -> (i32, i32, i32) {
    %c0_i32 = arith.constant 0 : i32
    %c0_i32_0 = arith.constant 0 : i32
    return %arg1, %c0_i32, %arg2 : i32, i32, i32
  }
  func.func @transform_1(%arg0: i32, %arg1: i32, %arg2: i32) -> (i32, i32) {
    %c0_i32 = arith.constant 0 : i32
    %c0_i32_0 = arith.constant 0 : i32
    return %arg0, %c0_i32 : i32, i32
  }
  func.func @transform_2(%arg0: i32, %arg1: i32, %arg2: i32) -> (i32, i32) {
    %c0_i32 = arith.constant 0 : i32
    %c0_i32_0 = arith.constant 0 : i32
    return %arg0, %c0_i32 : i32, i32
  }
  func.func @transform_3(%arg0: i32, %arg1: i32, %arg2: i32) -> (i32, i32, i32) {
    %c0_i32 = arith.constant 0 : i32
    return %arg1, %arg0, %arg2 : i32, i32, i32
  }
}

</mosaic_0001>

<llo_original>
// kernel: tpu_custom_call.1
$region0: #{tpu_custom_call.1}
  #allocation0 [shape = 'u32[]', space=smem, size = 0x4, offset = 0x4, fixed_abs, tag = 'smem constant byte address 0x4 - core index']
  #allocation1 [shape = 'u32[144,128]{1,0:T(1,128)}', space=vmem, size = 0x12000, scoped, tag = 'internal scratch']
  %s0 = inlined_call_operand.vmem [shape: f32[2,4,256], index: 0, kind: input, shape index: {}]
  %s1 = inlined_call_operand.vmem [shape: f32[8,4], index: 1, kind: input, shape index: {}]
  %s2 = inlined_call_operand.vmem [shape: f32[8,1], index: 2, kind: input, shape index: {}]
  %s3 = inlined_call_operand.hbm [shape: f32[2,8,256], index: 3, kind: output, shape index: {}]
  %s4 = sld [smem:[#allocation0]]
  $region22: #{tpu_custom_call.1} parent=0
    _
  %s6 = ssub.s32 1, %s4
  %s7 = scalar_select 0, %s6, %s4
  $region1: #{tpu_custom_call.1} parent=0
    #allocation2 [shape = 'u8[16384]{0}', space=vmem, size = 0x4000, scoped, tag = 'output window, operand 0, single buffered']
    #allocation3 [shape = 's32[1]{0}', space=sflag, size = 0x4, scoped, tag = 'scoped memory for tpu_custom_call.1']
    %8 = vsyncpa [#allocation3], 0
    // Predicated region
    $region2: #{tpu_custom_call.1} parent=1 // pred_check
      _
    $region3: #{tpu_custom_call.1} parent=1 // pred_check_branch
      %10 = sbr.rel (0) target = $region5
    $region4: #{tpu_custom_call.1} parent=1 // pred_region
      _
    $region5: #{tpu_custom_call.1} parent=1 // pred_fallthru
      _
    // Predicated region
    $region6: #{tpu_custom_call.1} parent=1 // pred_check
      _
    $region7: #{tpu_custom_call.1} parent=1 // pred_check_branch
      %12 = sbr.rel (0) target = $region9
    $region8: #{tpu_custom_call.1} parent=1 // pred_region
      _
    $region9: #{tpu_custom_call.1} parent=1 // pred_fallthru
      _
    // Predicated region
    $region10: #{tpu_custom_call.1} parent=1 // pred_check
      _
    $region11: #{tpu_custom_call.1} parent=1 // pred_check_branch
      %14 = sbr.rel (0) target = $region13
    $region12: #{tpu_custom_call.1} parent=1 // pred_region
      _
    $region13: #{tpu_custom_call.1} parent=1 // pred_fallthru
      _
    %v15 = vld [vmem:[%s1] sm:$0xff]
    %v16 = vld [vmem:[%s2] sm:$0xff]
    %v17 = vld [vmem:[%s0] sm:$0xff]
    %19 = vset.pattern.permute.xlu0 0
    %20 = vperm.xlu0 %19, %v16
    %v21 = vpop.permute.xlu0 %20
    %v24 = vcombine.high %v17, %v17
    %vm25 = vcmask 31744
    %v27 = vsel %vm25, %v15, 0
    %vm29 = vcmask 1043456
    %v30 = vsel %vm29, %v17, 0
    %v32 = vsel %vm29, %v24, 0
    %34 = vmatprep.subr.mxu0 %v32
    %35 = vmatpush1.msra.mxu0 %v30
    %36 = vmatprep.subr.mxu0 0.0
    %37 = vmatpush1.msra.mxu0 0.0
    %38 = vmatprep.subr.mxu0 0.0
    %39 = vmatpush1.msra.mxu0 0.0
    %40 = vmatprep.subr.mxu0 0.0
    %41 = vmatpush1.msra.mxu0 0.0
    %42 = vmatprep.subr.mxu0 0.0
    %43 = vmatpush1.msra.mxu0 0.0
    %44 = vmatprep.subr.mxu0 0.0
    %45 = vmatpush1.msra.mxu0 0.0
    %46 = vmatprep.subr.mxu0 0.0
    %47 = vmatpush1.msra.mxu0 0.0
    %48 = vmatprep.subr.mxu0 0.0
    %49 = vmatpush1.msra.mxu0 0.0
    %50 = vmatprep.subr.mxu0 0.0
    %51 = vmatpush1.msra.mxu0 0.0
    %52 = vmatprep.subr.mxu0 0.0
    %53 = vmatpush1.msra.mxu0 0.0
    %54 = vmatprep.subr.mxu0 0.0
    %55 = vmatpush1.msra.mxu0 0.0
    %56 = vmatprep.subr.mxu0 0.0
    %57 = vmatpush1.msra.mxu0 0.0
    %58 = vmatprep.subr.mxu0 0.0
    %59 = vmatpush1.msra.mxu0 0.0
    %60 = vmatprep.subr.mxu0 0.0
    %61 = vmatpush1.msra.mxu0 0.0
    %62 = vmatprep.subr.mxu0 0.0
    %63 = vmatpush1.msra.mxu0 0.0
    %64 = vmatprep.subr.mxu0 0.0
    %65 = vmatpush1.msra.mxu0 0.0
    %66 = vmatprep.subr.mxu0 0.0
    %67 = vmatpush1.msra.mxu0 0.0
    %68 = vmatprep.subr.mxu0 0.0
    %69 = vmatpush1.msra.mxu0 0.0
    %70 = vmatprep.subr.mxu0 0.0
    %71 = vmatpush1.msra.mxu0 0.0
    %72 = vmatprep.subr.mxu0 0.0
    %73 = vmatpush1.msra.mxu0 0.0
    %74 = vmatprep.subr.mxu0 0.0
    %75 = vmatpush1.msra.mxu0 0.0
    %76 = vmatprep.subr.mxu0 0.0
    %77 = vmatpush1.msra.mxu0 0.0
    %78 = vmatprep.subr.mxu0 0.0
    %79 = vmatpush1.msra.mxu0 0.0
    %80 = vmatprep.subr.mxu0 0.0
    %81 = vmatpush1.msra.mxu0 0.0
    %82 = vmatprep.subr.mxu0 0.0
    %83 = vmatpush1.msra.mxu0 0.0
    %84 = vmatprep.subr.mxu0 0.0
    %85 = vmatpush1.msra.mxu0 0.0
    %86 = vmatprep.subr.mxu0 0.0
    %87 = vmatpush1.msra.mxu0 0.0
    %88 = vmatprep.subr.mxu0 0.0
    %89 = vmatpush1.msra.mxu0 0.0
    %90 = vmatprep.subr.mxu0 0.0
    %91 = vmatpush1.msra.mxu0 0.0
    %92 = vmatprep.subr.mxu0 0.0
    %93 = vmatpush1.msra.mxu0 0.0
    %94 = vmatprep.subr.mxu0 0.0
    %95 = vmatpush1.msra.mxu0 0.0
    %96 = vmatprep.subr.mxu0 0.0
    %97 = vmatpush1.msra.mxu0 0.0
    %98 = vmatprep.mubr.f32.mxu0 0.0
    %99 = vmatmul.mubr.f32.gmra.mrb[0].mxu0 %v27
    %v100 = vpop.f32.mrb[0].mxu0
    %v101 = vadd.f32 %v21, %v100
    %v102 = vpop.f32.mrb[0].mxu0
    %v103 = vadd.f32 %v21, %v102
    %104 = vdwg.mxu0
    %105 = vst [vmem:[#allocation2] sm:$0xff] %v101
    %106 = vst [vmem:[#allocation2 + $0x8] sm:$0xff] %v103
    %s107 = scalar_lea.vmem %s0, 8
    %v108 = vld [vmem:[%s107] sm:$0xff]
    %v110 = vcombine.high %v108, %v108
    %v111 = vsel %vm29, %v108, 0
    %v113 = vsel %vm29, %v110, 0
    %115 = vmatprep.subr.mxu0 %v113
    %116 = vmatpush1.msra.mxu0 %v111
    %117 = vmatprep.subr.mxu0 0.0
    %118 = vmatpush1.msra.mxu0 0.0
    %119 = vmatprep.subr.mxu0 0.0
    %120 = vmatpush1.msra.mxu0 0.0
    %121 = vmatprep.subr.mxu0 0.0
    %122 = vmatpush1.msra.mxu0 0.0
    %123 = vmatprep.subr.mxu0 0.0
    %124 = vmatpush1.msra.mxu0 0.0
    %125 = vmatprep.subr.mxu0 0.0
    %126 = vmatpush1.msra.mxu0 0.0
    %127 = vmatprep.subr.mxu0 0.0
    %128 = vmatpush1.msra.mxu0 0.0
    %129 = vmatprep.subr.mxu0 0.0
    %130 = vmatpush1.msra.mxu0 0.0
    %131 = vmatprep.subr.mxu0 0.0
    %132 = vmatpush1.msra.mxu0 0.0
    %133 = vmatprep.subr.mxu0 0.0
    %134 = vmatpush1.msra.mxu0 0.0
    %135 = vmatprep.subr.mxu0 0.0
    %136 = vmatpush1.msra.mxu0 0.0
    %137 = vmatprep.subr.mxu0 0.0
    %138 = vmatpush1.msra.mxu0 0.0
    %139 = vmatprep.subr.mxu0 0.0
    %140 = vmatpush1.msra.mxu0 0.0
    %141 = vmatprep.subr.mxu0 0.0
    %142 = vmatpush1.msra.mxu0 0.0
    %143 = vmatprep.subr.mxu0 0.0
    %144 = vmatpush1.msra.mxu0 0.0
    %145 = vmatprep.subr.mxu0 0.0
    %146 = vmatpush1.msra.mxu0 0.0
    %147 = vmatprep.subr.mxu0 0.0
    %148 = vmatpush1.msra.mxu0 0.0
    %149 = vmatprep.subr.mxu0 0.0
    %150 = vmatpush1.msra.mxu0 0.0
    %151 = vmatprep.subr.mxu0 0.0
    %152 = vmatpush1.msra.mxu0 0.0
    %153 = vmatprep.subr.mxu0 0.0
    %154 = vmatpush1.msra.mxu0 0.0
    %155 = vmatprep.subr.mxu0 0.0
    %156 = vmatpush1.msra.mxu0 0.0
    %157 = vmatprep.subr.mxu0 0.0
    %158 = vmatpush1.msra.mxu0 0.0
    %159 = vmatprep.subr.mxu0 0.0
    %160 = vmatpush1.msra.mxu0 0.0
    %161 = vmatprep.subr.mxu0 0.0
    %162 = vmatpush1.msra.mxu0 0.0
    %163 = vmatprep.subr.mxu0 0.0
    %164 = vmatpush1.msra.mxu0 0.0
    %165 = vmatprep.subr.mxu0 0.0
    %166 = vmatpush1.msra.mxu0 0.0
    %167 = vmatprep.subr.mxu0 0.0
    %168 = vmatpush1.msra.mxu0 0.0
    %169 = vmatprep.subr.mxu0 0.0
    %170 = vmatpush1.msra.mxu0 0.0
    %171 = vmatprep.subr.mxu0 0.0
    %172 = vmatpush1.msra.mxu0 0.0
    %173 = vmatprep.subr.mxu0 0.0
    %174 = vmatpush1.msra.mxu0 0.0
    %175 = vmatprep.subr.mxu0 0.0
    %176 = vmatpush1.msra.mxu0 0.0
    %177 = vmatprep.subr.mxu0 0.0
    %178 = vmatpush1.msra.mxu0 0.0
    %179 = vmatprep.mubr.f32.mxu0 0.0
    %180 = vmatmul.mubr.f32.gmra.mrb[0].mxu0 %v27
    %v181 = vpop.f32.mrb[0].mxu0
    %v182 = vadd.f32 %v21, %v181
    %v183 = vpop.f32.mrb[0].mxu0
    %v184 = vadd.f32 %v21, %v183
    %185 = vdwg.mxu0
    %s186 = scalar_lea.vmem [#allocation2], 16
    %187 = vst [vmem:[%s186] sm:$0xff] %v182
    %188 = vst [vmem:[%s186 + $0x8] sm:$0xff] %v184
    // Predicated region
    $region14: #{tpu_custom_call.1} parent=1 // pred_check
      _
    $region15: #{tpu_custom_call.1} parent=1 // pred_check_branch
      %190 = sbr.rel (0) target = $region17
    $region16: #{tpu_custom_call.1} parent=1 // pred_region
      %s192 = ssub.s32 512, 512
      %193 = vsyncadd [#allocation3], %s192
      %s194 = sshll.u32 [#allocation2], 4
      %s195 = int_to_ptr.vmem [resolvable:$true] %s194
      %200 = dma.vmem_to_hbm [thread:$0]  %s195, 512, %s3, [#allocation3], 256, 256, 16
    $region17: #{tpu_custom_call.1} parent=1 // pred_fallthru
      _
    // Predicated region
    $region18: #{tpu_custom_call.1} parent=1 // pred_check
      _
    $region19: #{tpu_custom_call.1} parent=1 // pred_check_branch
      %202 = sbr.rel (0) target = $region21
    $region20: #{tpu_custom_call.1} parent=1 // pred_region
      %203 = dma.done [#allocation3], 512
    $region21: #{tpu_custom_call.1} parent=1 // pred_fallthru
      _
    %204 = vsyncpa [#allocation3], 1

</llo_original>
